<compile_context>
chip_gen: v5e
topology: v5e:2x2
jax: 0.10.0
libtpu: 0.0.40
codegen_flags: <defaults>
</compile_context>

<pallas_src>
import functools

import jax
import jax.numpy as jnp
from jax.experimental import pallas as pl
from jax.experimental.pallas import tpu as pltpu


def _relax_nll_kernel(x_ref, t_ref, cw_ref, loss_ref, cnt_ref, *,
                      num_classes, hw, block_px, blocks_per_split,
                      needs_mask, binary_target):
    """One (image n, split p, pixel-block j) grid step.

    x_ref   : (C,   block_px)  logits        (classes on sublanes, pixels on lanes)
    t_ref   : (C+1, block_px)  multi-hot target (last channel unused per-pixel)
    cw_ref  : (C, 1)           per-image class weights
    loss_ref, cnt_ref : (1, block_px) per-lane partial sums, resident across j
    """
    j = pl.program_id(2)

    @pl.when(j == 0)
    def _():
        loss_ref[...] = jnp.zeros_like(loss_ref)
        cnt_ref[...] = jnp.zeros_like(cnt_ref)

    c = num_classes
    x = x_ref[...].astype(jnp.float32)                  # (C, bpx)
    m = t_ref[0:c, :].astype(jnp.float32)               # (C, bpx)
    cw = cw_ref[...].astype(jnp.float32)                # (C, 1)

    # Border weights and ignore mask (pixels with no active class).
    msum = jnp.sum(m, axis=0, keepdims=True)            # (1, bpx)
    ignore = msum == 0.0
    bw = jnp.where(ignore, 1.0, msum)

    # customsoftmax in log space:
    #   log(max(softmax, m * (softmax*m).sum_c)) == max(log_softmax, log(m) + log_t)
    xmax = jnp.max(x, axis=0, keepdims=True)            # (1, bpx)
    xs = x - xmax
    e = jnp.exp(xs)                                     # (C, bpx)
    z = jnp.sum(e, axis=0, keepdims=True)               # (1, bpx)
    logz = jnp.log(z)
    log_soft = xs - logz                                # (C, bpx)
    t_num = jnp.sum(e * m, axis=0, keepdims=True)       # (1, bpx)
    log_t = jnp.log(t_num) - logz                       # -inf on ignore pixels (harmless)
    if binary_target:
        # For m in {0,1}: log(m)+log_t == log_t where m==1; m==0 channels are
        # multiplied by m below, so they contribute 0 either way. Saves C EUP logs.
        cs = jnp.maximum(log_soft, log_t)               # (C, bpx)
    else:
        # Exact path for fractional relaxed labels.
        cs = jnp.maximum(log_soft, jnp.log(m) + log_t)  # (C, bpx)

    pix = jnp.sum(m * cw * cs, axis=0, keepdims=True)   # (1, bpx)
    not_ign = jnp.where(ignore, 0.0, 1.0)
    loss_px = -(pix / bw) * not_ign                     # (1, bpx)
    cnt_px = jnp.where(ignore, 1.0, 0.0)                # (1, bpx)

    if needs_mask:
        # Only when hw % block_px != 0: neutralize the ragged tail lanes.
        # Applied AFTER loss_px so garbage tail lanes (possible NaN/Inf) cannot
        # leak into the accumulators via 0*NaN.
        p = pl.program_id(1)
        lane = jax.lax.broadcasted_iota(jnp.int32, loss_px.shape, 1)
        start = (p * blocks_per_split + j) * block_px
        valid = lane < (hw - start)
        loss_px = jnp.where(valid, loss_px, 0.0)
        cnt_px = jnp.where(valid, cnt_px, 0.0)

    loss_ref[...] += loss_px
    cnt_ref[...] += cnt_px


def _choose_block_px(hw, c, x_item, t_item, target_px, vmem_budget):
    """Largest pixel tile that fits the VMEM budget; prefer a multiple-of-128
    divisor of hw so the tail mask is statically skipped."""
    bytes_per_lane = (2 * (c * x_item + (c + 1) * t_item)   # double-buffered inputs
                      + 6 * c * 4                            # f32 elementwise temporaries
                      + 4 * 4)                               # resident accumulators, misc
    cap = max(128, (vmem_budget // bytes_per_lane) // 128 * 128)
    cand = min(target_px, hw, cap)
    if hw <= cand:
        return hw                                            # full row == full array dim
    best = 0
    d = cand - cand % 128
    while d >= 128:
        if hw % d == 0:
            best = d
            break
        d -= 128
    if best:
        return best                                          # no tail masking needed
    return max(128, cand - cand % 128)                       # ragged tail, masked in-kernel


def img_wt_loss_soft_nll(inputs, target, *, upper_bound=1.0, norm=False,
                         batch_weights=False, binary_target=True,
                         block_px=32768, num_splits=None,
                         vmem_budget_bytes=30 * 1024 * 1024):
    """inputs: (N, C, H, W) logits; target: (N, C+1, H, W) relaxed labels.

    Narrow dtypes are supported and recommended for large images: pass logits as
    bf16 and the multi-hot target as uint8 — the kernel casts to f32 internally.
    """
    # TODO(synk): cfg.BATCH_WEIGHTING / cfg.REDUCE_BORDER_ITER / cfg.ITER are not
    # provided by the spec; defaults used: per-image weights, border branch off.
    N, C, H, W = inputs.shape
    assert target.shape == (N, C + 1, H, W)
    hw = H * W

    # Free contiguous reshapes only -- no transpose, no pad of the big tensors.
    x3 = inputs.reshape(N, C, hw)
    t3 = target.reshape(N, C + 1, hw)

    # Class weights (calculate_weights): tiny histogram reduction, accumulated in
    # f32 directly (no full-size f32 materialization of target).
    if batch_weights:
        sums = jnp.sum(target, axis=(0, 2, 3), dtype=jnp.float32)     # (C+1,)
        hist = jnp.broadcast_to(sums / jnp.sum(sums), (N, C + 1))
    else:
        sums = jnp.sum(target, axis=(2, 3), dtype=jnp.float32)        # (N, C+1)
        hist = sums / jnp.sum(sums, axis=1, keepdims=True)
    if norm:
        # NOTE: deviates from PyTorch for empty classes (which would get 0*inf=nan);
        # empty classes get weight 1.0 here.
        cw = jnp.where(hist != 0.0,
                       upper_bound / jnp.where(hist != 0.0, hist, 1.0), 0.0) + 1.0
    else:
        cw = (hist != 0.0).astype(jnp.float32) * upper_bound * (1.0 - hist) + 1.0
    cw = cw[:, :C].reshape(N, C, 1).astype(jnp.float32)

    x_item = inputs.dtype.itemsize
    t_item = target.dtype.itemsize
    bpx = _choose_block_px(hw, C, x_item, t_item, block_px, vmem_budget_bytes)
    nj = pl.cdiv(hw, bpx)
    needs_mask = (nj * bpx != hw)

    # Extra "parallel" axis over pixel-block halves so both v7x TensorCores are
    # busy when N is small; a no-op on single-TC v5e/v6e.
    if num_splits is None:
        num_splits = 2 if (nj >= 2 and nj % 2 == 0) else 1
    if num_splits < 1 or nj % num_splits != 0:
        num_splits = 1
    nj_inner = nj // num_splits

    kernel = functools.partial(_relax_nll_kernel, num_classes=C, hw=hw,
                               block_px=bpx, blocks_per_split=nj_inner,
                               needs_mask=needs_mask, binary_target=binary_target)

    # Explicit VMEM limit: past v5e's 16 MiB scoped default, with headroom under
    # v7x's 64 MiB physical VMEM (bpx selection already keeps the estimate small).
    vmem_est = (2 * (C * x_item + (C + 1) * t_item) + 6 * C * 4 + 4 * 4) * bpx
    vmem_limit = int(min(max(vmem_est + (8 << 20), 32 << 20), 60 << 20))

    trans_per_px = (C + 2) if binary_target else (2 * C + 2)
    cost = pl.CostEstimate(
        flops=int(N * hw * (8 * C + 12)),
        transcendentals=int(N * hw * trans_per_px),
        bytes_accessed=int(x3.size * x_item + t3.size * t_item + cw.size * 4
                           + 2 * N * num_splits * bpx * 4),
    )

    # NOTE: if an xprof trace shows exposed DMA at block boundaries on v5e/v6e,
    # pipeline_mode=pl.Buffered(3) on the two large in_specs is cheap headroom.
    loss_part, cnt_part = pl.pallas_call(
        kernel,
        out_shape=(
            jax.ShapeDtypeStruct((N, num_splits, 1, bpx), jnp.float32),
            jax.ShapeDtypeStruct((N, num_splits, 1, bpx), jnp.float32),
        ),
        grid=(N, num_splits, nj_inner),
        in_specs=[
            pl.BlockSpec((None, C, bpx),
                         lambda n, p, j: (n, 0, p * nj_inner + j)),
            pl.BlockSpec((None, C + 1, bpx),
                         lambda n, p, j: (n, 0, p * nj_inner + j)),
            pl.BlockSpec((None, C, 1), lambda n, p, j: (n, 0, 0)),
        ],
        out_specs=(
            pl.BlockSpec((None, None, 1, bpx), lambda n, p, j: (n, p, 0, 0)),
            pl.BlockSpec((None, None, 1, bpx), lambda n, p, j: (n, p, 0, 0)),
        ),
        compiler_params=pltpu.CompilerParams(
            dimension_semantics=("parallel", "parallel", "arbitrary"),
            vmem_limit_bytes=vmem_limit),
        cost_estimate=cost,
    )(x3, t3, cw)

    loss_sum = jnp.sum(loss_part, axis=(1, 2, 3))   # (N,)
    mask_sum = jnp.sum(cnt_part, axis=(1, 2, 3))    # (N,) number of ignored pixels
    per_image = loss_sum / (float(hw) - mask_sum + 1.0)
    return jnp.mean(per_image)                       # NaN only if every pixel ignored (matches PyTorch)


def _reference(inputs, target, *, upper_bound=1.0, norm=False, batch_weights=False):
    """Pure-JAX mirror of the PyTorch module (REDUCE_BORDER_ITER == -1)."""
    N, C, H, W = inputs.shape
    tf = target.astype(jnp.float32)
    m_all = tf[:, :C]
    border = m_all.sum(axis=1)
    ign = border == 0
    border = jnp.where(ign, 1.0, border)

    if batch_weights:
        s = tf.sum(axis=(0, 2, 3))
        hist_b = s / s.sum()

    total = 0.0
    for i in range(N):
        if batch_weights:
            hist = hist_b
        else:
            s = tf[i].sum(axis=(1, 2))
            hist = s / s.sum()
        if norm:
            cwf = jnp.where(hist != 0.0,
                            upper_bound / jnp.where(hist != 0.0, hist, 1.0), 0.0) + 1.0
        else:
            cwf = (hist != 0.0).astype(jnp.float32) * upper_bound * (1.0 - hist) + 1.0
        cwf = cwf[:C]
        x = inputs[i].astype(jnp.float32)
        soft = jax.nn.softmax(x, axis=0)
        mi = m_all[i]
        tsum = (soft * mi).sum(axis=0, keepdims=True)
        cs = jnp.log(jnp.maximum(soft, mi * tsum))
        pix = (mi * cwf[:, None, None] * cs).sum(axis=0)
        lm = -(1.0 / border[i]) * pix * (1.0 - ign[i].astype(jnp.float32))
        li = lm.sum() / (H * W - ign[i].sum() + 1.0)
        total = total + li
    return total / N


if __name__ == "__main__":
    key = jax.random.PRNGKey(0)
    k1, k2, k3, k4, k5 = jax.random.split(key, 5)

    N, C, H, W = 2, 4, 16, 16
    x = jax.random.normal(k1, (N, C, H, W), dtype=jnp.float32)

    # Relaxed multi-hot target with C+1 channels: primary class one-hot, a second
    # class sprinkled in (border relaxation), ~10% ignore pixels, last channel =
    # ignore indicator.
    lab1 = jax.random.randint(k2, (N, H, W), 0, C)
    lab2 = jax.random.randint(k3, (N, H, W), 0, C)
    oh1 = jnp.moveaxis(jax.nn.one_hot(lab1, C, dtype=jnp.float32), -1, 1)
    oh2 = jnp.moveaxis(jax.nn.one_hot(lab2, C, dtype=jnp.float32), -1, 1)
    add2 = jax.random.bernoulli(k4, 0.3, (N, 1, H, W)).astype(jnp.float32)
    multi = jnp.maximum(oh1, oh2 * add2)
    ign = jax.random.bernoulli(k5, 0.1, (N, 1, H, W))
    m = jnp.where(ign, 0.0, multi)
    target = jnp.concatenate([m, ign.astype(jnp.float32)], axis=1)   # (N, C+1, H, W)

    # f32 inputs, f32 targets (tight check against the reference).
    loss = jax.block_until_ready(img_wt_loss_soft_nll(x, target))
    ref = jax.block_until_ready(_reference(x, target))
    assert jnp.isfinite(loss), loss
    assert jnp.allclose(loss, ref, atol=1e-5, rtol=1e-4), (loss, ref)

    # Narrow-dtype path (the recommended production configuration): bf16 logits,
    # uint8 multi-hot target; same f32 math inside the kernel.
    x_bf16 = x.astype(jnp.bfloat16)
    t_u8 = target.astype(jnp.uint8)
    loss_narrow = jax.block_until_ready(img_wt_loss_soft_nll(x_bf16, t_u8))
    ref_narrow = jax.block_until_ready(
        _reference(x_bf16.astype(jnp.float32), t_u8.astype(jnp.float32)))
    assert jnp.isfinite(loss_narrow), loss_narrow
    assert jnp.allclose(loss_narrow, ref_narrow, atol=1e-4, rtol=1e-3), (loss_narrow, ref_narrow)

    print("KERNEL_OK")
</pallas_src>

<mosaic_0001>
module attributes {stable_mosaic.version = 11 : i64} {
  func.func @_relax_nll_kernel(%arg0: i32, %arg1: i32, %arg2: i32, %arg3: memref<1x4x256xf32, #tpu.memory_space<vmem>>, %arg4: memref<1x5x256xf32, #tpu.memory_space<vmem>>, %arg5: memref<1x4x1xf32, #tpu.memory_space<vmem>>, %arg6: memref<1x1x1x256xf32, #tpu.memory_space<vmem>>, %arg7: memref<1x1x1x256xf32, #tpu.memory_space<vmem>>) attributes {dimension_semantics = [#tpu.dimension_semantics<parallel>, #tpu.dimension_semantics<parallel>, #tpu.dimension_semantics<arbitrary>], iteration_bounds = array<i64: 2, 1, 1>, scalar_prefetch = 0 : i64, scratch_operands = 0 : i64, tpu.core_type = #tpu.core_type<tc>, window_params = [{transform_indices = @transform_0, window_bounds = array<i64: 1, 4, 256>}, {transform_indices = @transform_1, window_bounds = array<i64: 1, 5, 256>}, {transform_indices = @transform_2, window_bounds = array<i64: 1, 4, 1>}, {transform_indices = @transform_3, window_bounds = array<i64: 1, 1, 1, 256>}, {transform_indices = @transform_4, window_bounds = array<i64: 1, 1, 1, 256>}]} {
    %c0_i32 = arith.constant 0 : i32
    %0 = arith.cmpi eq, %arg2, %c0_i32 : i32
    %1 = arith.extui %0 : i1 to i32
    %c0_i32_0 = arith.constant 0 : i32
    %2 = arith.cmpi ne, %1, %c0_i32_0 : i32
    scf.if %2 {
      %cst_36 = arith.constant 0.000000e+00 : f32
      %59 = vector.broadcast %cst_36 : f32 to vector<1x256xf32>
      %c0_37 = arith.constant 0 : index
      %c0_38 = arith.constant 0 : index
      %c0_39 = arith.constant 0 : index
      %c0_40 = arith.constant 0 : index
      %60 = vector.load %arg6[%c0_37, %c0_38, %c0_39, %c0_40] : memref<1x1x1x256xf32, #tpu.memory_space<vmem>>, vector<1x1x1x256xf32>
      %61 = vector.shape_cast %60 : vector<1x1x1x256xf32> to vector<1x256xf32>
      %62 = vector.shape_cast %59 : vector<1x256xf32> to vector<1x1x1x256xf32>
      tpu.vector_store %arg6[%c0_37, %c0_38, %c0_39, %c0_40], %62 {strides = array<i32>} : memref<1x1x1x256xf32, #tpu.memory_space<vmem>>, vector<1x1x1x256xf32>,
      %cst_41 = arith.constant 0.000000e+00 : f32
      %63 = vector.broadcast %cst_41 : f32 to vector<1x256xf32>
      %c0_42 = arith.constant 0 : index
      %c0_43 = arith.constant 0 : index
      %c0_44 = arith.constant 0 : index
      %c0_45 = arith.constant 0 : index
      %64 = vector.load %arg7[%c0_42, %c0_43, %c0_44, %c0_45] : memref<1x1x1x256xf32, #tpu.memory_space<vmem>>, vector<1x1x1x256xf32>
      %65 = vector.shape_cast %64 : vector<1x1x1x256xf32> to vector<1x256xf32>
      %66 = vector.shape_cast %63 : vector<1x256xf32> to vector<1x1x1x256xf32>
      tpu.vector_store %arg7[%c0_42, %c0_43, %c0_44, %c0_45], %66 {strides = array<i32>} : memref<1x1x1x256xf32, #tpu.memory_space<vmem>>, vector<1x1x1x256xf32>,
    } else {
    }
    %c0 = arith.constant 0 : index
    %c0_1 = arith.constant 0 : index
    %c0_2 = arith.constant 0 : index
    %3 = vector.load %arg3[%c0, %c0_1, %c0_2] : memref<1x4x256xf32, #tpu.memory_space<vmem>>, vector<1x4x256xf32>
    %4 = vector.shape_cast %3 : vector<1x4x256xf32> to vector<4x256xf32>
    %c0_3 = arith.constant 0 : index
    %c0_4 = arith.constant 0 : index
    %c0_5 = arith.constant 0 : index
    %5 = vector.load %arg4[%c0_3, %c0_4, %c0_5] : memref<1x5x256xf32, #tpu.memory_space<vmem>>, vector<1x4x256xf32>
    %6 = vector.shape_cast %5 : vector<1x4x256xf32> to vector<4x256xf32>
    %c0_6 = arith.constant 0 : index
    %c0_7 = arith.constant 0 : index
    %c0_8 = arith.constant 0 : index
    %7 = vector.load %arg5[%c0_6, %c0_7, %c0_8] : memref<1x4x1xf32, #tpu.memory_space<vmem>>, vector<1x4x1xf32>
    %8 = vector.shape_cast %7 : vector<1x4x1xf32> to vector<4x1xf32>
    %cst = arith.constant dense<0.000000e+00> : vector<256xf32>
    %9 = vector.multi_reduction <add>, %6, %cst [0] : vector<4x256xf32> to vector<256xf32>
    %10 = vector.shape_cast %9 : vector<256xf32> to vector<1x256xf32>
    %cst_9 = arith.constant 0.000000e+00 : f32
    %11 = vector.broadcast %cst_9 : f32 to vector<1x256xf32>
    %12 = arith.cmpf oeq, %10, %11 : vector<1x256xf32>
    %cst_10 = arith.constant 1.000000e+00 : f32
    %13 = vector.broadcast %cst_10 : f32 to vector<1x256xf32>
    %14 = arith.select %12, %13, %10 : vector<1x256xi1>, vector<1x256xf32>
    %cst_11 = arith.constant dense<0xFF800000> : vector<256xf32>
    %15 = vector.multi_reduction <maximumf>, %4, %cst_11 [0] : vector<4x256xf32> to vector<256xf32>
    %16 = vector.shape_cast %15 : vector<256xf32> to vector<1x256xf32>
    %17 = vector.broadcast %16 : vector<1x256xf32> to vector<4x256xf32>
    %18 = arith.subf %4, %17 : vector<4x256xf32>
    %19 = math.exp %18 : vector<4x256xf32>
    %cst_12 = arith.constant dense<0.000000e+00> : vector<256xf32>
    %20 = vector.multi_reduction <add>, %19, %cst_12 [0] : vector<4x256xf32> to vector<256xf32>
    %21 = vector.shape_cast %20 : vector<256xf32> to vector<1x256xf32>
    %22 = math.log %21 : vector<1x256xf32>
    %23 = vector.broadcast %22 : vector<1x256xf32> to vector<4x256xf32>
    %24 = arith.subf %18, %23 : vector<4x256xf32>
    %25 = arith.mulf %19, %6 : vector<4x256xf32>
    %cst_13 = arith.constant dense<0.000000e+00> : vector<256xf32>
    %26 = vector.multi_reduction <add>, %25, %cst_13 [0] : vector<4x256xf32> to vector<256xf32>
    %27 = vector.shape_cast %26 : vector<256xf32> to vector<1x256xf32>
    %28 = math.log %27 : vector<1x256xf32>
    %29 = arith.subf %28, %22 : vector<1x256xf32>
    %30 = vector.broadcast %29 : vector<1x256xf32> to vector<4x256xf32>
    %31 = arith.maximumf %24, %30 : vector<4x256xf32>
    %32 = vector.broadcast %8 : vector<4x1xf32> to vector<4x256xf32>
    %33 = arith.mulf %6, %32 : vector<4x256xf32>
    %34 = arith.mulf %33, %31 : vector<4x256xf32>
    %cst_14 = arith.constant dense<0.000000e+00> : vector<256xf32>
    %35 = vector.multi_reduction <add>, %34, %cst_14 [0] : vector<4x256xf32> to vector<256xf32>
    %36 = vector.shape_cast %35 : vector<256xf32> to vector<1x256xf32>
    %cst_15 = arith.constant 0.000000e+00 : f32
    %cst_16 = arith.constant 1.000000e+00 : f32
    %37 = vector.broadcast %cst_15 : f32 to vector<1x256xf32>
    %38 = vector.broadcast %cst_16 : f32 to vector<1x256xf32>
    %39 = arith.select %12, %37, %38 : vector<1x256xi1>, vector<1x256xf32>
    %40 = arith.divf %36, %14 : vector<1x256xf32>
    %cst_17 = arith.constant 0.000000e+00 : f32
    %41 = vector.broadcast %cst_17 : f32 to vector<1x256xf32>
    %42 = arith.subf %41, %40 : vector<1x256xf32>
    %43 = arith.mulf %42, %39 : vector<1x256xf32>
    %cst_18 = arith.constant 1.000000e+00 : f32
    %cst_19 = arith.constant 0.000000e+00 : f32
    %44 = vector.broadcast %cst_18 : f32 to vector<1x256xf32>
    %45 = vector.broadcast %cst_19 : f32 to vector<1x256xf32>
    %46 = arith.select %12, %44, %45 : vector<1x256xi1>, vector<1x256xf32>
    %c0_20 = arith.constant 0 : index
    %c0_21 = arith.constant 0 : index
    %c0_22 = arith.constant 0 : index
    %c0_23 = arith.constant 0 : index
    %47 = vector.load %arg6[%c0_20, %c0_21, %c0_22, %c0_23] : memref<1x1x1x256xf32, #tpu.memory_space<vmem>>, vector<1x1x1x256xf32>
    %48 = vector.shape_cast %47 : vector<1x1x1x256xf32> to vector<1x256xf32>
    %49 = arith.addf %48, %43 : vector<1x256xf32>
    %c0_24 = arith.constant 0 : index
    %c0_25 = arith.constant 0 : index
    %c0_26 = arith.constant 0 : index
    %c0_27 = arith.constant 0 : index
    %50 = vector.load %arg6[%c0_24, %c0_25, %c0_26, %c0_27] : memref<1x1x1x256xf32, #tpu.memory_space<vmem>>, vector<1x1x1x256xf32>
    %51 = vector.shape_cast %50 : vector<1x1x1x256xf32> to vector<1x256xf32>
    %52 = vector.shape_cast %49 : vector<1x256xf32> to vector<1x1x1x256xf32>
    tpu.vector_store %arg6[%c0_24, %c0_25, %c0_26, %c0_27], %52 {strides = array<i32>} : memref<1x1x1x256xf32, #tpu.memory_space<vmem>>, vector<1x1x1x256xf32>,
    %c0_28 = arith.constant 0 : index
    %c0_29 = arith.constant 0 : index
    %c0_30 = arith.constant 0 : index
    %c0_31 = arith.constant 0 : index
    %53 = vector.load %arg7[%c0_28, %c0_29, %c0_30, %c0_31] : memref<1x1x1x256xf32, #tpu.memory_space<vmem>>, vector<1x1x1x256xf32>
    %54 = vector.shape_cast %53 : vector<1x1x1x256xf32> to vector<1x256xf32>
    %55 = arith.addf %54, %46 : vector<1x256xf32>
    %c0_32 = arith.constant 0 : index
    %c0_33 = arith.constant 0 : index
    %c0_34 = arith.constant 0 : index
    %c0_35 = arith.constant 0 : index
    %56 = vector.load %arg7[%c0_32, %c0_33, %c0_34, %c0_35] : memref<1x1x1x256xf32, #tpu.memory_space<vmem>>, vector<1x1x1x256xf32>
    %57 = vector.shape_cast %56 : vector<1x1x1x256xf32> to vector<1x256xf32>
    %58 = vector.shape_cast %55 : vector<1x256xf32> to vector<1x1x1x256xf32>
    tpu.vector_store %arg7[%c0_32, %c0_33, %c0_34, %c0_35], %58 {strides = array<i32>} : memref<1x1x1x256xf32, #tpu.memory_space<vmem>>, vector<1x1x1x256xf32>,
    return
  }
  func.func @transform_0(%arg0: i32, %arg1: i32, %arg2: i32) -> (i32, i32, i32) {
    %c1_i32 = arith.constant 1 : i32
    %0 = arith.muli %arg1, %c1_i32 : i32
    %1 = arith.addi %0, %arg2 : i32
    %c0_i32 = arith.constant 0 : i32
    %c0_i32_0 = arith.constant 0 : i32
    return %arg0, %c0_i32, %1 : i32, i32, i32
  }
  func.func @transform_1(%arg0: i32, %arg1: i32, %arg2: i32) -> (i32, i32, i32) {
    %c1_i32 = arith.constant 1 : i32
    %0 = arith.muli %arg1, %c1_i32 : i32
    %1 = arith.addi %0, %arg2 : i32
    %c0_i32 = arith.constant 0 : i32
    %c0_i32_0 = arith.constant 0 : i32
    return %arg0, %c0_i32, %1 : i32, i32, i32
  }
  func.func @transform_2(%arg0: i32, %arg1: i32, %arg2: i32) -> (i32, i32, i32) {
    %c0_i32 = arith.constant 0 : i32
    %c0_i32_0 = arith.constant 0 : i32
    %c0_i32_1 = arith.constant 0 : i32
    return %arg0, %c0_i32, %c0_i32_0 : i32, i32, i32
  }
  func.func @transform_3(%arg0: i32, %arg1: i32, %arg2: i32) -> (i32, i32, i32, i32) {
    %c0_i32 = arith.constant 0 : i32
    %c0_i32_0 = arith.constant 0 : i32
    %c0_i32_1 = arith.constant 0 : i32
    return %arg0, %arg1, %c0_i32, %c0_i32_0 : i32, i32, i32, i32
  }
  func.func @transform_4(%arg0: i32, %arg1: i32, %arg2: i32) -> (i32, i32, i32, i32) {
    %c0_i32 = arith.constant 0 : i32
    %c0_i32_0 = arith.constant 0 : i32
    %c0_i32_1 = arith.constant 0 : i32
    return %arg0, %arg1, %c0_i32, %c0_i32_0 : i32, i32, i32, i32
  }
}

</mosaic_0001>

<llo_original>
// kernel: tpu_custom_call.1
$region0: #{tpu_custom_call.1}
  #allocation0 [shape = 'u32[]', space=smem, size = 0x4, offset = 0x4, fixed_abs, tag = 'smem constant byte address 0x4 - core index']
  #allocation1 [shape = 'u32[72,128]{1,0:T(1,128)}', space=vmem, size = 0x9000, scoped, tag = 'internal scratch']
  %s0 = inlined_call_operand.vmem [shape: f32[2,4,256], index: 0, kind: input, shape index: {}]
  %s1 = inlined_call_operand.vmem [shape: f32[2,5,256], index: 1, kind: input, shape index: {}]
  %s2 = inlined_call_operand.vmem [shape: f32[2,4,1], index: 2, kind: input, shape index: {}]
  %s3 = inlined_call_operand.hbm [shape: f32[2,1,1,256], index: 3, kind: output, shape index: {0}]
  %s4 = inlined_call_operand.hbm [shape: f32[2,1,1,256], index: 4, kind: output, shape index: {1}]
  %5 = xla_tuple %s3, %s4
  %s6 = sld [smem:[#allocation0]]
  $region57: #{tpu_custom_call.1} parent=0
    _
  %s8 = ssub.s32 1, %s6
  %s9 = scalar_select 0, %s8, %s6
  $region1: #{tpu_custom_call.1} parent=0
    #allocation2 [shape = 'u8[2048]{0}', space=vmem, size = 0x800, scoped, tag = 'output window, operand 0']
    #allocation3 [shape = 's32[2]{0}', space=sflag, size = 0x8, scoped, tag = 'scoped memory for tpu_custom_call.1']
    #allocation4 [shape = 'u8[2048]{0}', space=vmem, size = 0x800, scoped, tag = 'output window, operand 1']
    #allocation5 [shape = 's32[2]{0}', space=sflag, size = 0x8, scoped, tag = 'scoped memory for tpu_custom_call.1']
    %10 = vsyncpa [#allocation3], 0
    %s11 = scalar_lea.sflag [#allocation3], 1
    %12 = vsyncpa %s11, 0
    %13 = vsyncpa [#allocation5], 0
    %s14 = scalar_lea.sflag [#allocation5], 1
    %15 = vsyncpa %s14, 0
    loop: start=0, step=1, limit=4
    $region2: #{tpu_custom_call.1} parent=1 // loop_pre_header
      _
    $region3: #{tpu_custom_call.1} parent=1 // loop_header
      %s17 = sphi 0, %s21
      %p18 = scmp.ge.s32.totalorder %s17, 4
      %s24 = sphi 0, %s43
      %s25 = sphi 0, %s39
      %s26 = sphi 0, %s35
      %s27 = sphi 0, %s24
      %s28 = sphi 0, %s25
      %s29 = sphi 0, %s26
      %s30 = sphi 0, %s27
      %s31 = sphi 0, %s28
      %s32 = sphi 0, %s29
      %s50 = sphi 0, %s52
      %s53 = sphi 0, %s50
      %s54 = sphi 0, %s53
      %s70 = sphi 0, %s54
      %s80 = sphi 0, %s82
      %s83 = sphi 0, %s80
      %s84 = sphi 0, %s83
      %s100 = sphi 0, %s84
      %s106 = sphi 0, %s108
      %s109 = sphi 0, %s106
      %s110 = sphi 0, %s109
      %s126 = sphi 0, %s110
      %s134 = sphi 0, %s136
      %s137 = sphi 0, %s134
      %s138 = sphi 0, %s137
      %s154 = sphi 0, %s138
      %s162 = sphi 0, %s164
      %s165 = sphi 0, %s162
      %s166 = sphi 0, %s165
      %s182 = sphi 0, %s166
    $region4: #{tpu_custom_call.1} parent=1 // loop_header_branch
      %20 = sbr.rel (%p18) target = $region8
    $region5: #{tpu_custom_call.1} parent=1 // loop_body
      %s22 = ssub.s32 %s17, 1
      %s23 = ssub.s32 %s17, 2
      %s33 = sadd.s32 1, %s26
      %p34 = scmp.ge.s32.totalorder %s33, 1
      %s35 = scalar_select %p34, 0, %s33
      %s36 = sadd.s32 1, %s25
      %s37 = scalar_select %p34, %s36, %s25
      %p38 = scmp.ge.s32.totalorder %s37, 1
      %s39 = scalar_select %p38, 0, %s37
      %s40 = sadd.s32 1, %s24
      %s41 = scalar_select %p38, %s40, %s24
      %p42 = scmp.ge.s32.totalorder %s41, 2
      %s43 = scalar_select %p42, 0, %s41
      %s44 = sadd.s32 %s25, %s26
      %s45 = sadd.s32 %s39, %s35
      %s46 = ssub.s32 %s24, %s43
      %s47 = ssub.s32 %s44, %s45
      %s48 = sor.u32 %s46, %s47
      %p49 = scmp.eq.s32.totalorder %s48, 0
      %s51 = sadd.s32 %s50, 1
      %s52 = scalar_select %p49, %s50, %s51
      %p55 = pneg %p49
      %p56 = scmp.eq.s32.totalorder %s17, 1
      %p57 = por %p55, %p56
      %p58 = scmp.ne.s32.totalorder %s50, %s53
      %p59 = scmp.eq.s32.totalorder %s17, 0
      %p60 = por %p58, %p59
      %p61 = scmp.ne.s32.totalorder %s50, %s53
      %p62 = scmp.eq.s32.totalorder %s22, 1
      %p63 = por %p61, %p62
      %p64 = scmp.ne.s32.totalorder %s53, %s54
      %p65 = scmp.eq.s32.totalorder %s22, 0
      %p66 = por %p64, %p65
      %p67 = scmp.ne.s32.totalorder %s53, %s54
      %p68 = scmp.eq.s32.totalorder %s23, 1
      %p69 = por %p67, %p68
      %p71 = scmp.ne.s32.totalorder %s54, %s70
      %p72 = scmp.eq.s32.totalorder %s23, 0
      %p73 = por %p71, %p72
      %s74 = sadd.s32 %s25, %s26
      %s75 = sadd.s32 %s39, %s35
      %s76 = ssub.s32 %s24, %s43
      %s77 = ssub.s32 %s74, %s75
      %s78 = sor.u32 %s76, %s77
      %p79 = scmp.eq.s32.totalorder %s78, 0
      %s81 = sadd.s32 %s80, 1
      %s82 = scalar_select %p79, %s80, %s81
      %p85 = pneg %p79
      %p86 = scmp.eq.s32.totalorder %s17, 1
      %p87 = por %p85, %p86
      %p88 = scmp.ne.s32.totalorder %s80, %s83
      %p89 = scmp.eq.s32.totalorder %s17, 0
      %p90 = por %p88, %p89
      %p91 = scmp.ne.s32.totalorder %s80, %s83
      %p92 = scmp.eq.s32.totalorder %s22, 1
      %p93 = por %p91, %p92
      %p94 = scmp.ne.s32.totalorder %s83, %s84
      %p95 = scmp.eq.s32.totalorder %s22, 0
      %p96 = por %p94, %p95
      %p97 = scmp.ne.s32.totalorder %s83, %s84
      %p98 = scmp.eq.s32.totalorder %s23, 1
      %p99 = por %p97, %p98
      %p101 = scmp.ne.s32.totalorder %s84, %s100
      %p102 = scmp.eq.s32.totalorder %s23, 0
      %p103 = por %p101, %p102
      %s104 = ssub.s32 %s24, %s43
      %p105 = scmp.eq.s32.totalorder %s104, 0
      %s107 = sadd.s32 %s106, 1
      %s108 = scalar_select %p105, %s106, %s107
      %p111 = pneg %p105
      %p112 = scmp.eq.s32.totalorder %s17, 1
      %p113 = por %p111, %p112
      %p114 = scmp.ne.s32.totalorder %s106, %s109
      %p115 = scmp.eq.s32.totalorder %s17, 0
      %p116 = por %p114, %p115
      %p117 = scmp.ne.s32.totalorder %s106, %s109
      %p118 = scmp.eq.s32.totalorder %s22, 1
      %p119 = por %p117, %p118
      %p120 = scmp.ne.s32.totalorder %s109, %s110
      %p121 = scmp.eq.s32.totalorder %s22, 0
      %p122 = por %p120, %p121
      %p123 = scmp.ne.s32.totalorder %s109, %s110
      %p124 = scmp.eq.s32.totalorder %s23, 1
      %p125 = por %p123, %p124
      %p127 = scmp.ne.s32.totalorder %s110, %s126
      %p128 = scmp.eq.s32.totalorder %s23, 0
      %p129 = por %p127, %p128
      %s130 = ssub.s32 %s24, %s43
      %s131 = ssub.s32 %s25, %s39
      %s132 = sor.u32 %s130, %s131
      %p133 = scmp.eq.s32.totalorder %s132, 0
      %s135 = sadd.s32 %s134, 1
      %s136 = scalar_select %p133, %s134, %s135
      %p139 = pneg %p133
      %p140 = scmp.eq.s32.totalorder %s17, 1
      %p141 = por %p139, %p140
      %p142 = scmp.ne.s32.totalorder %s134, %s137
      %p143 = scmp.eq.s32.totalorder %s17, 0
      %p144 = por %p142, %p143
      %p145 = scmp.ne.s32.totalorder %s134, %s137
      %p146 = scmp.eq.s32.totalorder %s22, 1
      %p147 = por %p145, %p146
      %p148 = scmp.ne.s32.totalorder %s137, %s138
      %p149 = scmp.eq.s32.totalorder %s22, 0
      %p150 = por %p148, %p149
      %p151 = scmp.ne.s32.totalorder %s137, %s138
      %p152 = scmp.eq.s32.totalorder %s23, 1
      %p153 = por %p151, %p152
      %p155 = scmp.ne.s32.totalorder %s138, %s154
      %p156 = scmp.eq.s32.totalorder %s23, 0
      %p157 = por %p155, %p156
      %s158 = ssub.s32 %s24, %s43
      %s159 = ssub.s32 %s25, %s39
      %s160 = sor.u32 %s158, %s159
      %p161 = scmp.eq.s32.totalorder %s160, 0
      %s163 = sadd.s32 %s162, 1
      %s164 = scalar_select %p161, %s162, %s163
      %p167 = pneg %p161
      %p168 = scmp.eq.s32.totalorder %s17, 1
      %p169 = por %p167, %p168
      %p170 = scmp.ne.s32.totalorder %s162, %s165
      %p171 = scmp.eq.s32.totalorder %s17, 0
      %p172 = por %p170, %p171
      %p173 = scmp.ne.s32.totalorder %s162, %s165
      %p174 = scmp.eq.s32.totalorder %s22, 1
      %p175 = por %p173, %p174
      %p176 = scmp.ne.s32.totalorder %s165, %s166
      %p177 = scmp.eq.s32.totalorder %s22, 0
      %p178 = por %p176, %p177
      %p179 = scmp.ne.s32.totalorder %s165, %s166
      %p180 = scmp.eq.s32.totalorder %s23, 1
      %p181 = por %p179, %p180
      %p183 = scmp.ne.s32.totalorder %s166, %s182
      %p184 = scmp.eq.s32.totalorder %s23, 0
      %p185 = por %p183, %p184
      %p186 = scmp.le.s32.totalorder 1, %s17
      %p187 = scmp.lt.s32.totalorder %s17, 3
      %p188 = pnand %p186, %p187
      %p189 = pneg %p188
      // Predicated region
      $region9: #{tpu_custom_call.1} parent=5 // pred_check
        _
      $region10: #{tpu_custom_call.1} parent=5 // pred_check_branch
        %191 = sbr.rel (%p188) target = $region12
      $region11: #{tpu_custom_call.1} parent=5 // pred_region
        %s192 = ssub.s32 %s17, 1
      $region12: #{tpu_custom_call.1} parent=5 // pred_fallthru
        _
      %p193 = scmp.lt.s32.totalorder %s17, 2
      // Predicated region
      $region13: #{tpu_custom_call.1} parent=5 // pred_check
        %p194 = pneg %p193
      $region14: #{tpu_custom_call.1} parent=5 // pred_check_branch
        %196 = sbr.rel (%p194) target = $region16
      $region15: #{tpu_custom_call.1} parent=5 // pred_region
        // Predicated region
        $region17: #{tpu_custom_call.1} parent=15 // pred_check
          %p197 = pneg %p60
        $region18: #{tpu_custom_call.1} parent=15 // pred_check_branch
          %199 = sbr.rel (%p197) target = $region20
        $region19: #{tpu_custom_call.1} parent=15 // pred_region
          %s200 = sadd.s32 %s25, %s26
          %s201 = smul.u32 2, %s200
          %p202 = scmp.lt.s32.totalorder %s24, 1
          %s203 = scalar_select %p202, %s24, 1
          %p204 = scmp.lt.s32.totalorder %s201, 1
          %s205 = scalar_select %p204, %s201, 1
          %s206 = smul.addr %s203, 2
          %s207 = sadd.s32 %s205, %s206
          %s208 = smul.addr %s207, 4
          %s209 = scalar_lea.vmem %s0, %s208
          %s210 = sadd.s32 %s25, %s26
          %s211 = smul.u32 2, %s210
        $region20: #{tpu_custom_call.1} parent=15 // pred_fallthru
          _
        // Predicated region
        $region21: #{tpu_custom_call.1} parent=15 // pred_check
          %p212 = pneg %p90
        $region22: #{tpu_custom_call.1} parent=15 // pred_check_branch
          %214 = sbr.rel (%p212) target = $region24
        $region23: #{tpu_custom_call.1} parent=15 // pred_region
          %s215 = sadd.s32 %s25, %s26
          %s216 = smul.u32 2, %s215
          %p217 = scmp.lt.s32.totalorder %s24, 1
          %s218 = scalar_select %p217, %s24, 1
          %p219 = scmp.lt.s32.totalorder %s216, 1
          %s220 = scalar_select %p219, %s216, 1
          %s221 = smul.addr %s218, 2
          %s222 = sadd.s32 %s220, %s221
          %s223 = smul.addr %s222, 8
          %s224 = scalar_lea.vmem %s1, %s223
          %s225 = sadd.s32 %s25, %s26
          %s226 = smul.u32 2, %s225
        $region24: #{tpu_custom_call.1} parent=15 // pred_fallthru
          _
        // Predicated region
        $region25: #{tpu_custom_call.1} parent=15 // pred_check
          %p227 = pneg %p116
        $region26: #{tpu_custom_call.1} parent=15 // pred_check_branch
          %229 = sbr.rel (%p227) target = $region28
        $region27: #{tpu_custom_call.1} parent=15 // pred_region
          %p230 = scmp.lt.s32.totalorder %s24, 1
          %s231 = scalar_select %p230, %s24, 1
          %s232 = smul.addr %s231, 4
          %s233 = scalar_lea.vmem %s2, %s232
        $region28: #{tpu_custom_call.1} parent=15 // pred_fallthru
          _
      $region16: #{tpu_custom_call.1} parent=5 // pred_fallthru
        _
      %p234 = scmp.le.s32.totalorder 1, %s17
      %p235 = scmp.lt.s32.totalorder %s17, 3
      %p236 = pnand %p234, %p235
      %p237 = pneg %p236
      // Predicated region
      $region29: #{tpu_custom_call.1} parent=5 // pred_check
        _
      $region30: #{tpu_custom_call.1} parent=5 // pred_check_branch
        %239 = sbr.rel (%p236) target = $region32
      $region31: #{tpu_custom_call.1} parent=5 // pred_region
        %s240 = ssub.s32 %s17, 1
        %s241 = sadd.s32 %s28, %s29
        %s242 = smul.u32 2, %s241
        %p243 = scmp.lt.s32.totalorder %s27, 1
        %s244 = scalar_select %p243, %s27, 1
        %p245 = scmp.lt.s32.totalorder %s242, 1
        %s246 = scalar_select %p245, %s242, 1
        %s247 = smul.addr %s244, 2
        %s248 = sadd.s32 %s246, %s247
        %s249 = smul.addr %s248, 4
        %s250 = scalar_lea.vmem %s0, %s249
        %p251 = pneg %p66
        %p252 = pneg %p63
        %s253 = sadd.s32 %s28, %s29
        %s254 = smul.u32 2, %s253
        %p255 = scmp.lt.s32.totalorder %s27, 1
        %s256 = scalar_select %p255, %s27, 1
        %p257 = scmp.lt.s32.totalorder %s254, 1
        %s258 = scalar_select %p257, %s254, 1
        %s259 = smul.addr %s256, 2
        %s260 = sadd.s32 %s258, %s259
        %s261 = smul.addr %s260, 8
        %s262 = scalar_lea.vmem %s1, %s261
        %p263 = pneg %p96
        %p264 = pneg %p93
        %p265 = scmp.lt.s32.totalorder %s27, 1
        %s266 = scalar_select %p265, %s27, 1
        %s267 = smul.addr %s266, 4
        %s268 = scalar_lea.vmem %s2, %s267
        %p269 = pneg %p122
        %p270 = pneg %p119
        %p271 = pneg %p150
        %p272 = pneg %p147
        %s273 = sand.u32 %s137, 1
        %s274 = scalar_lea.sflag [#allocation3], %s273
        %s275 = sand.u32 %s137, 1
        %s276 = smul.addr %s275, 2
        %s277 = scalar_lea.vmem [#allocation2], %s276
        %p278 = pneg %p178
        %p279 = pneg %p175
        %s280 = sand.u32 %s165, 1
        %s281 = scalar_lea.sflag [#allocation5], %s280
        %s282 = sand.u32 %s165, 1
        %s283 = smul.addr %s282, 2
        %s284 = scalar_lea.vmem [#allocation4], %s283
        %s285 = sadd.s32 %s28, %s29
        %s286 = smul.u32 2, %s285
        %p287 = scmp.lt.s32.totalorder %s27, 1
        %s288 = scalar_select %p287, %s27, 1
        %p289 = scmp.lt.s32.totalorder %s286, 1
        %s290 = scalar_select %p289, %s286, 1
        %s291 = smul.addr %s288, 2
        %s292 = sadd.s32 %s290, %s291
        %s293 = smul.addr %s292, 4
        %s294 = scalar_lea.vmem %s0, %s293
        %s295 = sadd.s32 %s28, %s29
        %s296 = smul.u32 2, %s295
        %s297 = sadd.s32 %s28, %s29
        %s298 = smul.u32 2, %s297
        %p299 = scmp.lt.s32.totalorder %s27, 1
        %s300 = scalar_select %p299, %s27, 1
        %p301 = scmp.lt.s32.totalorder %s298, 1
        %s302 = scalar_select %p301, %s298, 1
        %s303 = smul.addr %s300, 2
        %s304 = sadd.s32 %s302, %s303
        %s305 = smul.addr %s304, 8
        %s306 = scalar_lea.vmem %s1, %s305
        %s307 = sadd.s32 %s28, %s29
        %s308 = smul.u32 2, %s307
        %p309 = scmp.lt.s32.totalorder %s27, 1
        %s310 = scalar_select %p309, %s27, 1
        %s311 = smul.addr %s310, 4
        %s312 = scalar_lea.vmem %s2, %s311
        %p313 = scmp.eq.s32.totalorder %s29, 0
        // Predicated region
        $region33: #{tpu_custom_call.1} parent=31 // pred_check
          %p314 = pneg %p313
        $region34: #{tpu_custom_call.1} parent=31 // pred_check_branch
          %316 = sbr.rel (%p314) target = $region36
        $region35: #{tpu_custom_call.1} parent=31 // pred_region
          %v317 = vlaneseq
          %vm318 = vcmp.ge.s32.totalorder %v317, 0
          %vm319 = vcmp.lt.s32.totalorder %v317, 256
          %vm320 = vmand %vm318, %vm319
          %321 = vst.msk [vmem:[%s277] sm:$0x3] %vm320, 0.0
          %322 = vst.msk [vmem:[%s284] sm:$0x3] %vm320, 0.0
        $region36: #{tpu_custom_call.1} parent=31 // pred_fallthru
          _
        %v323 = vld [vmem:[%s294] sm:$0xff]
        %v324 = vld [vmem:[%s306] sm:$0xf]
        %v325 = vld [vmem:[%s306 + $0x8] sm:$0xf]
        %v326 = vld [vmem:[%s312] sm:$0xf]
        %vm327 = vcmask 1043456
        %v328 = vsel %vm327, %v324, 0.0
        %v329 = vrot.slane %v328, 4
        %v330 = vadd.f32 %v328, %v329
        %v331 = vrot.slane %v330, 2
        %v332 = vadd.f32 %v330, %v331
        %v333 = vrot.slane %v332, 1
        %v334 = vadd.f32 %v332, %v333
        %v335 = vsel %vm327, %v325, 0.0
        %v336 = vrot.slane %v335, 4
        %v337 = vadd.f32 %v335, %v336
        %v338 = vrot.slane %v337, 2
        %v339 = vadd.f32 %v337, %v338
        %v340 = vrot.slane %v339, 1
        %v341 = vadd.f32 %v339, %v340
        %vm342 = vcmp.eq.f32.partialorder %v334, 0.0
        %vm343 = vcmp.eq.f32.partialorder %v341, 0.0
        %v344 = vsel %vm342, 1.0, %v334
        %v345 = vsel %vm343, 1.0, %v341
        %347 = vst [vmem:[#allocation1] ss:$2 sm:$0xff] %v323
        %v348 = vld.sshfl [vmem:[#allocation1] sm:$0xff pattern:$0x75316420]
        %v349 = vld.sshfl [vmem:[#allocation1 + $0x8] sm:$0xff pattern:$0x75316420]
        %v352 = vsel %vm327, %v348, -inf
        %v353 = vrot.slane %v352, 4
        %v354 = vmax.f32 %v352, %v353
        %v355 = vrot.slane %v354, 2
        %v356 = vmax.f32 %v354, %v355
        %v357 = vrot.slane %v356, 1
        %v358 = vmax.f32 %v356, %v357
        %v359 = vsel %vm327, %v349, -inf
        %v360 = vrot.slane %v359, 4
        %v361 = vmax.f32 %v359, %v360
        %v362 = vrot.slane %v361, 2
        %v363 = vmax.f32 %v361, %v362
        %v364 = vrot.slane %v363, 1
        %v365 = vmax.f32 %v363, %v364
        %v368 = vrot.slane %v365, 4
        %v369 = vsel %vm327, %v358, %v368
        %v371 = vsub.f32 %v323, %v369
        %v372 = vmul.f32 %v371, 1.442695
        %v373 = vpow.pop %v372
        %375 = vst [vmem:[#allocation1] ss:$2 sm:$0xff] %v373
        %v376 = vld.sshfl [vmem:[#allocation1] sm:$0xff pattern:$0x75316420]
        %v377 = vld.sshfl [vmem:[#allocation1 + $0x8] sm:$0xff pattern:$0x75316420]
        %v380 = vsel %vm327, %v376, 0.0
        %v381 = vrot.slane %v380, 4
        %v382 = vadd.f32 %v380, %v381
        %v383 = vrot.slane %v382, 2
        %v384 = vadd.f32 %v382, %v383
        %v385 = vrot.slane %v384, 1
        %v386 = vadd.f32 %v384, %v385
        %v387 = vsel %vm327, %v377, 0.0
        %v388 = vrot.slane %v387, 4
        %v389 = vadd.f32 %v387, %v388
        %v390 = vrot.slane %v389, 2
        %v391 = vadd.f32 %v389, %v390
        %v392 = vrot.slane %v391, 1
        %v393 = vadd.f32 %v391, %v392
        %v394 = vlog2.pop %v386
        %v395 = vmul.f32 %v394, 0.6931472
        %v396 = vlog2.pop %v393
        %v397 = vmul.f32 %v396, 0.6931472
        %v400 = vrot.slane %v397, 4
        %v401 = vsel %vm327, %v395, %v400
        %v403 = vsub.f32 %v371, %v401
        %v406 = vrot.slane %v325, 4
        %v407 = vsel %vm327, %v324, %v406
        %v409 = vmul.f32 %v373, %v407
        %411 = vst [vmem:[#allocation1] ss:$2 sm:$0xff] %v409
        %v412 = vld.sshfl [vmem:[#allocation1] sm:$0xff pattern:$0x75316420]
        %v413 = vld.sshfl [vmem:[#allocation1 + $0x8] sm:$0xff pattern:$0x75316420]
        %v416 = vsel %vm327, %v412, 0.0
        %v417 = vrot.slane %v416, 4
        %v418 = vadd.f32 %v416, %v417
        %v419 = vrot.slane %v418, 2
        %v420 = vadd.f32 %v418, %v419
        %v421 = vrot.slane %v420, 1
        %v422 = vadd.f32 %v420, %v421
        %v423 = vsel %vm327, %v413, 0.0
        %v424 = vrot.slane %v423, 4
        %v425 = vadd.f32 %v423, %v424
        %v426 = vrot.slane %v425, 2
        %v427 = vadd.f32 %v425, %v426
        %v428 = vrot.slane %v427, 1
        %v429 = vadd.f32 %v427, %v428
        %v430 = vlog2.pop %v422
        %v431 = vmul.f32 %v430, 0.6931472
        %v432 = vlog2.pop %v429
        %v433 = vmul.f32 %v432, 0.6931472
        %v434 = vsub.f32 %v431, %v395
        %v435 = vsub.f32 %v433, %v397
        %v438 = vrot.slane %v435, 4
        %v439 = vsel %vm327, %v434, %v438
        %v441 = vmax.f32 %v403, %v439
        %443 = vset.pattern.permute.xlu0 0
        %444 = vperm.xlu0 %443, %v326
        %v445 = vpop.permute.xlu0 %444
        %v447 = vmul.f32 %v324, %v445
        %v448 = vmul.f32 %v325, %v445
        %450 = vst [vmem:[#allocation1] ss:$2 sm:$0xff] %v441
        %v451 = vld.sshfl [vmem:[#allocation1] sm:$0xff pattern:$0x75316420]
        %v452 = vld.sshfl [vmem:[#allocation1 + $0x8] sm:$0xff pattern:$0x75316420]
        %v455 = vmul.f32 %v447, %v451
        %v456 = vmul.f32 %v448, %v452
        %v457 = vsel %vm327, %v455, 0.0
        %v458 = vrot.slane %v457, 4
        %v459 = vadd.f32 %v457, %v458
        %v460 = vrot.slane %v459, 2
        %v461 = vadd.f32 %v459, %v460
        %v462 = vrot.slane %v461, 1
        %v463 = vadd.f32 %v461, %v462
        %v464 = vsel %vm327, %v456, 0.0
        %v465 = vrot.slane %v464, 4
        %v466 = vadd.f32 %v464, %v465
        %v467 = vrot.slane %v466, 2
        %v468 = vadd.f32 %v466, %v467
        %v469 = vrot.slane %v468, 1
        %v470 = vadd.f32 %v468, %v469
        %v471 = vsel %vm342, 0.0, 1.0
        %v472 = vsel %vm343, 0.0, 1.0
        %v473 = vrcp.pop %v344
        %v474 = vmul.f32 %v344, %v473
        %v475 = vsub.f32 1.0, %v474
        %v476 = vmul.f32 %v473, %v475
        %v477 = vadd.f32 %v473, %v476
        %vm478 = vweird.f32 %v344
        %vm479 = vweird.f32 %v473
        %vm480 = vmor %vm478, %vm479
        %v481 = vsel %vm480, %v473, %v477
        %v482 = vand.u32 2147483647, %v344
        %vm483 = vcmp.eq.f32.partialorder %v482, 8.507059e+37
        %v484 = vand.u32 %v344, 2147483648
        %v485 = vor.u32 1.1754944e-38, %v484
        %v486 = vsel %vm483, %v485, %v481
        %v487 = vmul.f32 %v463, %v486
        %v488 = vrcp.pop %v345
        %v489 = vmul.f32 %v345, %v488
        %v490 = vsub.f32 1.0, %v489
        %v491 = vmul.f32 %v488, %v490
        %v492 = vadd.f32 %v488, %v491
        %vm493 = vweird.f32 %v345
        %vm494 = vweird.f32 %v488
        %vm495 = vmor %vm493, %vm494
        %v496 = vsel %vm495, %v488, %v492
        %v497 = vand.u32 2147483647, %v345
        %vm498 = vcmp.eq.f32.partialorder %v497, 8.507059e+37
        %v499 = vand.u32 %v345, 2147483648
        %v500 = vor.u32 1.1754944e-38, %v499
        %v501 = vsel %vm498, %v500, %v496
        %v502 = vmul.f32 %v470, %v501
        %v503 = vsub.f32 0.0, %v487
        %v504 = vsub.f32 0.0, %v502
        %v505 = vmul.f32 %v503, %v471
        %v506 = vmul.f32 %v504, %v472
        %v507 = vsel %vm342, 1.0, 0.0
        %v508 = vsel %vm343, 1.0, 0.0
        %v509 = vld [vmem:[%s277] sm:$0x3]
        %v512 = vrot.slane %v506, 7
        %vm513 = vcmask 1040384
        %v514 = vsel %vm513, %v505, %v512
        %v516 = vadd.f32 %v509, %v514
        %v517 = vlaneseq
        %vm518 = vcmp.ge.s32.totalorder %v517, 0
        %vm519 = vcmp.lt.s32.totalorder %v517, 256
        %vm520 = vmand %vm518, %vm519
        %521 = vst.msk [vmem:[%s277] sm:$0x3] %vm520, %v516
        %v522 = vld [vmem:[%s284] sm:$0x3]
        %v525 = vrot.slane %v508, 7
        %v526 = vsel %vm513, %v507, %v525
        %v528 = vadd.f32 %v522, %v526
        %529 = vst.msk [vmem:[%s284] sm:$0x3] %vm520, %v528
        %s530 = sand.u32 %s137, 1
        %s531 = scalar_lea.sflag [#allocation3], %s530
        %s532 = sand.u32 %s137, 1
        %s533 = smul.addr %s532, 2
        %s534 = scalar_lea.vmem [#allocation2], %s533
        %s535 = sand.u32 %s165, 1
        %s536 = scalar_lea.sflag [#allocation5], %s535
        %s537 = sand.u32 %s165, 1
        %s538 = smul.addr %s537, 2
        %s539 = scalar_lea.vmem [#allocation4], %s538
        // Predicated region
        $region37: #{tpu_custom_call.1} parent=31 // pred_check
          %p540 = pneg %p147
        $region38: #{tpu_custom_call.1} parent=31 // pred_check_branch
          %542 = sbr.rel (%p540) target = $region40
        $region39: #{tpu_custom_call.1} parent=31 // pred_region
          %544 = vsyncadd %s531, 0
          %s545 = smul.addr %s28, 2
          %s546 = smul.addr %s27, 2
          %s547 = sadd.s32 %s545, %s546
          %s548 = scalar_lea.hbm %s3, %s547
          %s550 = sshll.u32 %s534, 4
          %s551 = int_to_ptr.vmem [resolvable:$true] %s550
          %s552 = sshll.u32 %s548, 4
          %s553 = int_to_ptr.hbm [resolvable:$true] %s552
          %555 = dma.vmem_to_hbm [thread:$0]  %s551, 32, %s553, %s531
        $region40: #{tpu_custom_call.1} parent=31 // pred_fallthru
          _
        // Predicated region
        $region41: #{tpu_custom_call.1} parent=31 // pred_check
          %p556 = pneg %p175
        $region42: #{tpu_custom_call.1} parent=31 // pred_check_branch
          %558 = sbr.rel (%p556) target = $region44
        $region43: #{tpu_custom_call.1} parent=31 // pred_region
          %560 = vsyncadd %s536, 0
          %s561 = smul.addr %s28, 2
          %s562 = smul.addr %s27, 2
          %s563 = sadd.s32 %s561, %s562
          %s564 = scalar_lea.hbm %s4, %s563
          %s566 = sshll.u32 %s539, 4
          %s567 = int_to_ptr.vmem [resolvable:$true] %s566
          %s568 = sshll.u32 %s564, 4
          %s569 = int_to_ptr.hbm [resolvable:$true] %s568
          %571 = dma.vmem_to_hbm [thread:$0]  %s567, 32, %s569, %s536
        $region44: #{tpu_custom_call.1} parent=31 // pred_fallthru
          _
      $region32: #{tpu_custom_call.1} parent=5 // pred_fallthru
        _
      %p572 = scmp.le.s32.totalorder 2, %s17
      // Predicated region
      $region45: #{tpu_custom_call.1} parent=5 // pred_check
        %p573 = pneg %p572
      $region46: #{tpu_custom_call.1} parent=5 // pred_check_branch
        %575 = sbr.rel (%p573) target = $region48
      $region47: #{tpu_custom_call.1} parent=5 // pred_region
        %s576 = ssub.s32 %s17, 2
        // Predicated region
        $region49: #{tpu_custom_call.1} parent=47 // pred_check
          %p577 = pneg %p153
        $region50: #{tpu_custom_call.1} parent=47 // pred_check_branch
          %579 = sbr.rel (%p577) target = $region52
        $region51: #{tpu_custom_call.1} parent=47 // pred_region
          %s580 = sand.u32 %s138, 1
          %s581 = scalar_lea.sflag [#allocation3], %s580
          %s582 = sand.u32 %s138, 1
          %s583 = smul.addr %s582, 2
          %s584 = scalar_lea.vmem [#allocation2], %s583
          %586 = dma.done %s581, 32
        $region52: #{tpu_custom_call.1} parent=47 // pred_fallthru
          _
        // Predicated region
        $region53: #{tpu_custom_call.1} parent=47 // pred_check
          %p587 = pneg %p181
        $region54: #{tpu_custom_call.1} parent=47 // pred_check_branch
          %589 = sbr.rel (%p587) target = $region56
        $region55: #{tpu_custom_call.1} parent=47 // pred_region
          %s590 = sand.u32 %s166, 1
          %s591 = scalar_lea.sflag [#allocation5], %s590
          %s592 = sand.u32 %s166, 1
          %s593 = smul.addr %s592, 2
          %s594 = scalar_lea.vmem [#allocation4], %s593
          %596 = dma.done %s591, 32
        $region56: #{tpu_custom_call.1} parent=47 // pred_fallthru
          _
      $region48: #{tpu_custom_call.1} parent=5 // pred_fallthru
        _
    $region6: #{tpu_custom_call.1} parent=1 // loop_footer
      %s21 = sadd.s32 1, %s17
    $region7: #{tpu_custom_call.1} parent=1 // loop_footer_branch
      %16 = sbr.rel target = $region3
    $region8: #{tpu_custom_call.1} parent=1 // loop_exit
      _
    %597 = vsyncpa [#allocation3], 1
    %s598 = scalar_lea.sflag [#allocation3], 1
    %599 = vsyncpa %s598, 1
    %600 = vsyncpa [#allocation5], 1
    %s601 = scalar_lea.sflag [#allocation5], 1
    %602 = vsyncpa %s601, 1

</llo_original>
